<compile_context>
chip_gen: v7x
topology: tpu7x:2x2x1
jax: 0.10.0
libtpu: 0.0.40
codegen_flags: <defaults>
</compile_context>

<pallas_src>
import functools

import jax
import jax.numpy as jnp
from jax.experimental import pallas as pl
from jax.experimental.pallas import tpu as pltpu


# ---------------------------------------------------------------------------
# Parameter setup (deterministic, mirrors CameraPoseQuan.__init__)
# ---------------------------------------------------------------------------
def init_params(key):
    kq, kt = jax.random.split(key)
    q = jax.random.normal(kq, (4,), dtype=jnp.float32) * 1e-6 \
        + jnp.array([1.0, 0.0, 0.0, 0.0], dtype=jnp.float32)
    t = jax.random.normal(kt, (3,), dtype=jnp.float32) * 1e-6
    return q, t


def quaternion_to_matrix(quaternions):
    """Convert (..., 4) quaternions (real part first) to (..., 3, 3) rotations."""
    r, i, j, k = [quaternions[..., n] for n in range(4)]
    two_s = 2.0 / jnp.sum(quaternions * quaternions, axis=-1)
    o = jnp.stack(
        (
            1 - two_s * (j * j + k * k),
            two_s * (i * j - k * r),
            two_s * (i * k + j * r),
            two_s * (i * j + k * r),
            1 - two_s * (i * i + k * k),
            two_s * (j * k - i * r),
            two_s * (i * k - j * r),
            two_s * (j * k + i * r),
            1 - two_s * (i * i + j * j),
        ),
        axis=-1,
    )
    return o.reshape(quaternions.shape[:-1] + (3, 3))


def build_exp_i(q, t):
    """Assemble the 4x4 pose matrix exp_i (plain-JAX glue, tiny)."""
    R = quaternion_to_matrix(q)                     # (3, 3)
    exp_i = jnp.zeros((4, 4), dtype=jnp.float32)
    exp_i = exp_i.at[:3, :3].set(R)
    exp_i = exp_i.at[:3, 3].set(t)
    exp_i = exp_i.at[3, 3].set(1.0)
    return exp_i


def build_rolled_coeffs(exp_i):
    """(8, 4) table C with C[2m+p, j] = exp_i[m, (m + j) % 4].

    With the packed (8, cols) point layout (packed row 2m+p = half p of
    original row m), the kernel computes
        out[s, :] = sum_j C[s, j] * roll(x, shift=8-2j, axis=0)[s, :]
    which equals exp_i @ x re-packed the same way (only even sublane shifts
    appear because the interleaved 8x8 pose matrix is 2x2-block structured).
    """
    rows = []
    for m in range(4):
        row = jnp.stack([exp_i[m, (m + j) % 4] for j in range(4)])
        rows.append(row)
        rows.append(row)
    return jnp.stack(rows, axis=0).astype(jnp.float32)   # (8, 4)


# ---------------------------------------------------------------------------
# Pallas kernel: dense VPU/XLU formulation of the 4x4 pose transform
# ---------------------------------------------------------------------------
def pose_apply_kernel(c_ref, x_ref, o_ref):
    # c_ref: (8, 4)  coefficient table (one vreg, same block every grid step)
    # x_ref: (8, TN) packed points tile
    # o_ref: (8, TN) packed output tile
    x = x_ref[...]
    c = c_ref[...]
    acc = c[:, 0:1] * x
    for j in range(1, 4):
        # rolled[s, :] = x[(s + 2j) % 8, :]  -- sublane rotate on the XLU
        xr = pltpu.roll(x, shift=8 - 2 * j, axis=0)
        acc = acc + c[:, j:j + 1] * xr
    o_ref[...] = acc


def _round_up(a, b):
    return (a + b - 1) // b * b


@functools.partial(jax.jit, static_argnames=("tile_cols",))
def camera_pose_quan_forward(q, t, x, *, tile_cols=64 * 1024):
    """Compute exp_i(q, t) @ x for x of shape (4, N) float32. Returns (4, N)."""
    assert x.ndim == 2 and x.shape[0] == 4
    n = x.shape[1]
    x = x.astype(jnp.float32)

    exp_i = build_exp_i(q, t)            # (4, 4)
    coeffs = build_rolled_coeffs(exp_i)  # (8, 4)

    # Pack (4, N) -> (8, N/2): rows 2m / 2m+1 hold the first / second half of
    # original row m (free row-major reshape). Only pad (a single column) when
    # N is odd; the ragged tile boundary is handled by the Pallas grid, so the
    # common case does NOT pay an extra HBM copy of x.
    n_eff = n if n % 2 == 0 else n + 1
    if n_eff != n:
        x = jnp.pad(x, ((0, 0), (0, n_eff - n)))
    cols = n_eff // 2
    xp = x.reshape(8, cols)

    tile_cols = max(128, _round_up(tile_cols, 128))
    if cols <= tile_cols:
        tn = cols                       # single exact block (== full array dim)
        grid = (1,)
    else:
        tn = tile_cols                  # lane-dense tiles, last block partial
        grid = (pl.cdiv(cols, tn),)

    out_p = pl.pallas_call(
        pose_apply_kernel,
        out_shape=jax.ShapeDtypeStruct((8, cols), jnp.float32),
        grid_spec=pltpu.PrefetchScalarGridSpec(
            num_scalar_prefetch=0,
            grid=grid,
            in_specs=[
                # Tiny coefficient table: same block every step (fetched once).
                pl.BlockSpec((8, 4), lambda j: (0, 0)),
                # Packed points, large lane-dense tiles along the point axis.
                pl.BlockSpec((8, tn), lambda j: (0, j)),
            ],
            out_specs=pl.BlockSpec((8, tn), lambda j: (0, j)),
        ),
        compiler_params=pltpu.CompilerParams(
            dimension_semantics=("parallel",),       # v7x: shard grid over 2 TCs
            vmem_limit_bytes=32 * 1024 * 1024,       # headroom for 2 MiB tiles
        ),
        cost_estimate=pl.CostEstimate(
            flops=32 * n,
            transcendentals=0,
            bytes_accessed=2 * 8 * cols * 4 + 8 * 4 * 4,
        ),
    )(coeffs, xp)

    return out_p.reshape(4, n_eff)[:, :n]


if __name__ == "__main__":
    key = jax.random.PRNGKey(0)
    kp, kx = jax.random.split(key)
    q, t = init_params(kp)

    # Small example: 300 homogeneous points.
    N = 300
    x = jax.random.normal(kx, (4, N), dtype=jnp.float32)
    ref = build_exp_i(q, t) @ x

    # Default path (single exact block at this small size).
    out = jax.block_until_ready(camera_pose_quan_forward(q, t, x))
    assert out.shape == (4, N)
    assert jnp.allclose(out, ref, atol=1e-5, rtol=1e-5)

    # Multi-block path with a ragged last tile (forces tn=128, grid=2).
    out2 = jax.block_until_ready(camera_pose_quan_forward(q, t, x, tile_cols=128))
    assert jnp.allclose(out2, ref, atol=1e-5, rtol=1e-5)

    # Odd-N path (exercises the single-column pad).
    N3 = 301
    x3 = jax.random.normal(jax.random.PRNGKey(3), (4, N3), dtype=jnp.float32)
    ref3 = build_exp_i(q, t) @ x3
    out3 = jax.block_until_ready(camera_pose_quan_forward(q, t, x3))
    assert out3.shape == (4, N3)
    assert jnp.allclose(out3, ref3, atol=1e-5, rtol=1e-5)

    print("KERNEL_OK")
</pallas_src>

<mosaic_0001>
module attributes {stable_mosaic.version = 11 : i64} {
  func.func @pose_apply_kernel(%arg0: i32, %arg1: memref<8x4xf32, #tpu.memory_space<vmem>>, %arg2: memref<8x150xf32, #tpu.memory_space<vmem>>, %arg3: memref<8x150xf32, #tpu.memory_space<vmem>>) attributes {dimension_semantics = [#tpu.dimension_semantics<parallel>], iteration_bounds = array<i64: 1>, scalar_prefetch = 0 : i64, scratch_operands = 0 : i64, tpu.core_type = #tpu.core_type<tc>, window_params = [{pipeline_mode = #tpu.pipeline_mode<synchronous>, transform_indices = @transform_0, window_bounds = array<i64: 8, 4>}, {transform_indices = @transform_1, window_bounds = array<i64: 8, 150>}, {transform_indices = @transform_2, window_bounds = array<i64: 8, 150>}]} {
    %c0 = arith.constant 0 : index
    %c0_0 = arith.constant 0 : index
    %0 = vector.load %arg2[%c0, %c0_0] : memref<8x150xf32, #tpu.memory_space<vmem>>, vector<8x150xf32>
    %c0_1 = arith.constant 0 : index
    %c0_2 = arith.constant 0 : index
    %1 = vector.load %arg1[%c0_1, %c0_2] : memref<8x4xf32, #tpu.memory_space<vmem>>, vector<8x4xf32>
    %2 = vector.extract_strided_slice %1 {offsets = [0, 0], sizes = [8, 1], strides = [1, 1]} : vector<8x4xf32> to vector<8x1xf32>
    %3 = vector.broadcast %2 : vector<8x1xf32> to vector<8x150xf32>
    %4 = arith.mulf %3, %0 : vector<8x150xf32>
    %c6_i32 = arith.constant 6 : i32
    %5 = tpu.dynamic_rotate %0 by %c6_i32 dim 0 : vector<8x150xf32>, i32 -> vector<8x150xf32>
    %6 = vector.extract_strided_slice %1 {offsets = [0, 1], sizes = [8, 1], strides = [1, 1]} : vector<8x4xf32> to vector<8x1xf32>
    %7 = vector.broadcast %6 : vector<8x1xf32> to vector<8x150xf32>
    %8 = arith.mulf %7, %5 : vector<8x150xf32>
    %9 = arith.addf %4, %8 : vector<8x150xf32>
    %c4_i32 = arith.constant 4 : i32
    %10 = tpu.dynamic_rotate %0 by %c4_i32 dim 0 : vector<8x150xf32>, i32 -> vector<8x150xf32>
    %11 = vector.extract_strided_slice %1 {offsets = [0, 2], sizes = [8, 1], strides = [1, 1]} : vector<8x4xf32> to vector<8x1xf32>
    %12 = vector.broadcast %11 : vector<8x1xf32> to vector<8x150xf32>
    %13 = arith.mulf %12, %10 : vector<8x150xf32>
    %14 = arith.addf %9, %13 : vector<8x150xf32>
    %c2_i32 = arith.constant 2 : i32
    %15 = tpu.dynamic_rotate %0 by %c2_i32 dim 0 : vector<8x150xf32>, i32 -> vector<8x150xf32>
    %16 = vector.extract_strided_slice %1 {offsets = [0, 3], sizes = [8, 1], strides = [1, 1]} : vector<8x4xf32> to vector<8x1xf32>
    %17 = vector.broadcast %16 : vector<8x1xf32> to vector<8x150xf32>
    %18 = arith.mulf %17, %15 : vector<8x150xf32>
    %19 = arith.addf %14, %18 : vector<8x150xf32>
    %c0_3 = arith.constant 0 : index
    %c0_4 = arith.constant 0 : index
    %20 = vector.load %arg3[%c0_3, %c0_4] : memref<8x150xf32, #tpu.memory_space<vmem>>, vector<8x150xf32>
    tpu.vector_store %arg3[%c0_3, %c0_4], %19 {strides = array<i32>} : memref<8x150xf32, #tpu.memory_space<vmem>>, vector<8x150xf32>,
    return
  }
  func.func @transform_0(%arg0: i32) -> (i32, i32) {
    %c0_i32 = arith.constant 0 : i32
    %c0_i32_0 = arith.constant 0 : i32
    %c0_i32_1 = arith.constant 0 : i32
    return %c0_i32, %c0_i32_0 : i32, i32
  }
  func.func @transform_1(%arg0: i32) -> (i32, i32) {
    %c0_i32 = arith.constant 0 : i32
    %c0_i32_0 = arith.constant 0 : i32
    return %c0_i32, %arg0 : i32, i32
  }
  func.func @transform_2(%arg0: i32) -> (i32, i32) {
    %c0_i32 = arith.constant 0 : i32
    %c0_i32_0 = arith.constant 0 : i32
    return %c0_i32, %arg0 : i32, i32
  }
}

</mosaic_0001>

<llo_original>
// kernel: camera_pose_quan_forward.1
$region0: #{camera_pose_quan_forward.1}
  #allocation0 [shape = 'u32[]', space=smem, size = 0x4, offset = 0x4, fixed_abs, tag = 'smem constant byte address 0x4 - core index']
  #allocation1 [shape = 'u32[144,128]{1,0:T(1,128)}', space=vmem, size = 0x12000, scoped, tag = 'internal scratch']
  %s0 = inlined_call_operand.vmem [shape: f32[8,4], index: 0, kind: input, shape index: {}]
  %s1 = inlined_call_operand.vmem [shape: f32[8,150], index: 1, kind: input, shape index: {}]
  %s2 = inlined_call_operand.vmem [shape: f32[8,150], index: 2, kind: output, shape index: {}]
  %s3 = sld [smem:[#allocation0]]
  $region18: #{camera_pose_quan_forward.1} parent=0
    _
  %s5 = ssub.s32 1, %s3
  %s6 = scalar_select 0, %s5, %s3
  // Predicated region
  $region2: #{camera_pose_quan_forward.1} parent=0 // pred_check
    _
  $region3: #{camera_pose_quan_forward.1} parent=0 // pred_check_branch
    %8 = sbr.rel (0) target = $region5
  $region4: #{camera_pose_quan_forward.1} parent=0 // pred_region
    _
  $region5: #{camera_pose_quan_forward.1} parent=0 // pred_fallthru
    _
  // Predicated region
  $region6: #{camera_pose_quan_forward.1} parent=0 // pred_check
    _
  $region7: #{camera_pose_quan_forward.1} parent=0 // pred_check_branch
    %10 = sbr.rel (0) target = $region9
  $region8: #{camera_pose_quan_forward.1} parent=0 // pred_region
    _
  $region9: #{camera_pose_quan_forward.1} parent=0 // pred_fallthru
    _
  %v11 = vld [vmem:[%s1] sm:$0xff]
  %v12 = vld [vmem:[%s1 + $0x8] sm:$0xff]
  %v13 = vld [vmem:[%s0] sm:$0xff]
  %15 = vset.pattern.permute.xlu0 0
  %16 = vperm.xlu0 %15, %v13
  %v17 = vpop.permute.xlu0 %16
  %v19 = vmul.f32 %v17, %v11
  %v20 = vmul.f32 %v17, %v12
  %v21 = vrot.slane %v11, 2
  %v22 = vrot.slane %v12, 2
  %23 = vset.pattern.permute.xlu0 1
  %24 = vperm.xlu0 %23, %v13
  %v25 = vpop.permute.xlu0 %24
  %v27 = vmul.f32 %v25, %v21
  %v28 = vmul.f32 %v25, %v22
  %v29 = vadd.f32 %v19, %v27
  %v30 = vadd.f32 %v20, %v28
  %v31 = vrot.slane %v11, 4
  %v32 = vrot.slane %v12, 4
  %33 = vset.pattern.permute.xlu0 2
  %34 = vperm.xlu0 %33, %v13
  %v35 = vpop.permute.xlu0 %34
  %v37 = vmul.f32 %v35, %v31
  %v38 = vmul.f32 %v35, %v32
  %v39 = vadd.f32 %v29, %v37
  %v40 = vadd.f32 %v30, %v38
  %v41 = vrot.slane %v11, 6
  %v42 = vrot.slane %v12, 6
  %43 = vset.pattern.permute.xlu0 3
  %44 = vperm.xlu0 %43, %v13
  %v45 = vpop.permute.xlu0 %44
  %v47 = vmul.f32 %v45, %v41
  %v48 = vmul.f32 %v45, %v42
  %v49 = vadd.f32 %v39, %v47
  %v50 = vadd.f32 %v40, %v48
  %51 = vst [vmem:[%s2] sm:$0xff] %v49
  %vm52 = vcmask 179200
  %53 = vst.msk [vmem:[%s2 + $0x8] sm:$0xff] %vm52, %v50
  // Predicated region
  $region10: #{camera_pose_quan_forward.1} parent=0 // pred_check
    _
  $region11: #{camera_pose_quan_forward.1} parent=0 // pred_check_branch
    %55 = sbr.rel (0) target = $region13
  $region12: #{camera_pose_quan_forward.1} parent=0 // pred_region
    _
  $region13: #{camera_pose_quan_forward.1} parent=0 // pred_fallthru
    _
  // Predicated region
  $region14: #{camera_pose_quan_forward.1} parent=0 // pred_check
    _
  $region15: #{camera_pose_quan_forward.1} parent=0 // pred_check_branch
    %57 = sbr.rel (0) target = $region17
  $region16: #{camera_pose_quan_forward.1} parent=0 // pred_region
    _
  $region17: #{camera_pose_quan_forward.1} parent=0 // pred_fallthru
    _

</llo_original>
